<compile_context>
chip_gen: v7x
topology: tpu7x:2x2x1
jax: 0.10.0
libtpu: 0.0.40
codegen_flags: <defaults>
</compile_context>

<pallas_src>
import math
from functools import partial

import jax
import jax.numpy as jnp
from jax.experimental import pallas as pl
from jax.experimental.pallas import tpu as pltpu


def _round_up(v: int, m: int) -> int:
    return (v + m - 1) // m * m


# --------------------------------------------------------------------------
# Kernels
# --------------------------------------------------------------------------

def _el_kernel_single_k(x_ref, wt_ref, *rest, scale, lr_mul, apply_bias, apply_act):
    """grid = (M/tm, N/tn): whole contraction in one MXU call (common case)."""
    if apply_bias:
        b_ref, o_ref = rest
    else:
        (o_ref,) = rest
    out = jnp.dot(x_ref[...], wt_ref[...], preferred_element_type=jnp.float32)
    out = out * scale                              # x @ (W*scale).T == scale * (x @ W.T)
    if apply_bias:
        out = out + b_ref[...].astype(jnp.float32) * lr_mul
    if apply_act:
        out = jnp.where(out >= 0.0, out, 0.01 * out)   # F.leaky_relu default slope
    o_ref[...] = out.astype(o_ref.dtype)


def _el_kernel_multi_k(x_ref, wt_ref, *rest, scale, lr_mul, apply_bias, apply_act):
    """grid = (M/tm, N/tn, K/tk): f32 VMEM accumulator resident across K."""
    if apply_bias:
        b_ref, o_ref, acc_ref = rest
    else:
        o_ref, acc_ref = rest
    k = pl.program_id(2)

    @pl.when(k == 0)
    def _():
        acc_ref[...] = jnp.zeros_like(acc_ref)

    acc_ref[...] += jnp.dot(x_ref[...], wt_ref[...],
                            preferred_element_type=jnp.float32)

    @pl.when(k == pl.num_programs(2) - 1)
    def _():
        out = acc_ref[...] * scale
        if apply_bias:
            out = out + b_ref[...].astype(jnp.float32) * lr_mul
        if apply_act:
            out = jnp.where(out >= 0.0, out, 0.01 * out)
        o_ref[...] = out.astype(o_ref.dtype)


# --------------------------------------------------------------------------
# Wrapper
# --------------------------------------------------------------------------

def prepare_equal_linear_weight(weight, *, compute_dtype=jnp.bfloat16,
                                tk_max=1024, tn_max=1024):
    """One-time weight layout work: transpose to lane-dense (K, N), pad to the
    tile grid and cast to the MXU compute dtype.  Do this at parameter init and
    reuse across forwards (keeps the per-call hot path free of HBM copies)."""
    out_dim, in_dim = weight.shape
    tk = min(tk_max, _round_up(in_dim, 128))
    tn = min(tn_max, _round_up(out_dim, 128))
    Kp = _round_up(in_dim, tk)
    Np = _round_up(out_dim, tn)
    wt = jnp.transpose(weight).astype(compute_dtype)          # (K, N)
    if (Kp, Np) != (in_dim, out_dim):
        wt = jnp.pad(wt, ((0, Kp - in_dim), (0, Np - out_dim)))
    return {"wt": wt, "in_dim": in_dim, "out_dim": out_dim,
            "tk": tk, "tn": tn, "Kp": Kp, "Np": Np,
            "compute_dtype": compute_dtype}


def equal_linear(x, weight=None, bias=None, *, lr_mul=1.0, activation=None,
                 prepared=None, compute_dtype=jnp.bfloat16,
                 tm_max=512, tn_max=1024, tk_max=1024,
                 vmem_limit_bytes=32 * 1024 * 1024):
    """EqualLinear forward.  x: (..., in_dim); weight: (out_dim, in_dim) or a
    `prepared` dict from prepare_equal_linear_weight()."""
    if prepared is None:
        assert weight is not None, "pass either weight or prepared"
        prepared = prepare_equal_linear_weight(
            weight, compute_dtype=compute_dtype, tk_max=tk_max, tn_max=tn_max)

    in_dim = prepared["in_dim"]
    out_dim = prepared["out_dim"]
    wt = prepared["wt"]
    Kp, Np = prepared["Kp"], prepared["Np"]
    tk, tn = prepared["tk"], prepared["tn"]
    cdtype = prepared["compute_dtype"]

    assert x.shape[-1] == in_dim
    lead_shape = x.shape[:-1]
    M = 1
    for d in lead_shape:
        M *= d

    scale = 1.0 / math.sqrt(in_dim) * lr_mul
    apply_act = activation is not None
    apply_bias = (not apply_act) and (bias is not None)

    # (16,128)-aligned tiles (bf16 sublane packing), capped for VMEM budget.
    tm = min(tm_max, _round_up(M, 16))
    Mp = _round_up(M, tm)

    # v7x has 2 TensorCores: make sure at least one "parallel" axis has >=2
    # blocks for small-M problems (halve tn, but never below 256).
    if Mp // tm == 1 and Np // tn == 1 and tn >= 512 and tn % 256 == 0:
        tn //= 2

    nm, nn, nk = Mp // tm, Np // tn, Kp // tk

    # Activation path: x cast to the MXU compute dtype, padded to the tile grid.
    x2 = x.reshape(M, in_dim).astype(cdtype)
    if (Mp, Kp) != (M, in_dim):
        x2 = jnp.pad(x2, ((0, Mp - M), (0, Kp - in_dim)))

    inputs = [x2, wt]
    out_dtype = x.dtype

    # 3-deep buffering on the weight stream for small-batch, mem-bound shapes
    # (skipped for the degenerate 1-2 step grids and for large tiles).
    use_buffered_w = (Mp <= 128) and (nn * nk >= 3)

    kernel_kwargs = dict(scale=float(scale), lr_mul=float(lr_mul),
                         apply_bias=apply_bias, apply_act=apply_act)

    if nk == 1:
        # ---- single-K fast path: 2-D grid, no accumulator scratch ----
        grid = (nm, nn)
        in_specs = [pl.BlockSpec((tm, Kp), lambda i, j: (i, 0))]
        if use_buffered_w:
            in_specs.append(pl.BlockSpec((Kp, tn), lambda i, j: (0, j),
                                         pipeline_mode=pl.Buffered(3)))
        else:
            in_specs.append(pl.BlockSpec((Kp, tn), lambda i, j: (0, j)))
        if apply_bias:
            in_specs.append(pl.BlockSpec((1, tn), lambda i, j: (0, j)))
        out_specs = pl.BlockSpec((tm, tn), lambda i, j: (i, j))
        scratch_shapes = []
        kernel = partial(_el_kernel_single_k, **kernel_kwargs)
        dim_sem = ("parallel", "parallel")
    else:
        # ---- multi-K path: 3-D grid, K last ("arbitrary"), f32 accumulator ----
        grid = (nm, nn, nk)
        in_specs = [pl.BlockSpec((tm, tk), lambda i, j, k: (i, k))]
        if use_buffered_w:
            in_specs.append(pl.BlockSpec((tk, tn), lambda i, j, k: (k, j),
                                         pipeline_mode=pl.Buffered(3)))
        else:
            in_specs.append(pl.BlockSpec((tk, tn), lambda i, j, k: (k, j)))
        if apply_bias:
            in_specs.append(pl.BlockSpec((1, tn), lambda i, j, k: (0, j)))
        out_specs = pl.BlockSpec((tm, tn), lambda i, j, k: (i, j))
        scratch_shapes = [pltpu.VMEM((tm, tn), jnp.float32)]
        kernel = partial(_el_kernel_multi_k, **kernel_kwargs)
        dim_sem = ("parallel", "parallel", "arbitrary")

    if apply_bias:
        b2 = bias.astype(jnp.float32).reshape(1, out_dim)
        if Np != out_dim:
            b2 = jnp.pad(b2, ((0, 0), (0, Np - out_dim)))
        inputs.append(b2)

    cost = pl.CostEstimate(
        flops=2 * Mp * Np * Kp,
        transcendentals=0,
        bytes_accessed=(Mp * Kp * x2.dtype.itemsize
                        + Kp * Np * wt.dtype.itemsize
                        + Mp * Np * jnp.dtype(out_dtype).itemsize),
    )

    out_padded = pl.pallas_call(
        kernel,
        out_shape=jax.ShapeDtypeStruct((Mp, Np), out_dtype),
        grid_spec=pltpu.PrefetchScalarGridSpec(
            num_scalar_prefetch=0,
            grid=grid,
            in_specs=in_specs,
            out_specs=out_specs,
            scratch_shapes=scratch_shapes,
        ),
        compiler_params=pltpu.CompilerParams(
            dimension_semantics=dim_sem,
            vmem_limit_bytes=vmem_limit_bytes),
        cost_estimate=cost,
    )(*inputs)

    out = out_padded[:M, :out_dim]
    return out.reshape(lead_shape + (out_dim,))


# --------------------------------------------------------------------------
# Reference (module semantics, f32) + self-test
# --------------------------------------------------------------------------

def _reference(x, weight, bias, lr_mul, activation):
    scale = 1.0 / math.sqrt(weight.shape[1]) * lr_mul
    if activation is not None:
        t = x @ (weight * scale).T
        return jnp.where(t >= 0.0, t, 0.01 * t)
    if bias is not None:
        return x @ (weight * scale).T + bias * lr_mul
    return x @ (weight * scale).T


if __name__ == "__main__":
    key = jax.random.PRNGKey(0)
    k1, k2, k3, k4, k5, k6 = jax.random.split(key, 6)

    # --- Case A: small GAN-MLP shape; single-K fast path, both branches ---
    batch, in_dim, out_dim = 8, 32, 64
    lr_mul = 0.5
    x = jax.random.normal(k1, (batch, in_dim), dtype=jnp.float32)
    weight = jax.random.normal(k2, (out_dim, in_dim), dtype=jnp.float32) / lr_mul
    bias = jax.random.normal(k3, (out_dim,), dtype=jnp.float32)

    prep = prepare_equal_linear_weight(weight)     # weight layout work hoisted, done once
    out_bias = equal_linear(x, bias=bias, lr_mul=lr_mul, activation=None, prepared=prep)
    out_act = equal_linear(x, bias=bias, lr_mul=lr_mul, activation="lrelu", prepared=prep)

    # --- Case B: wide in_dim exercises the multi-K accumulator path (2 K blocks) ---
    mb, in_dim_b, out_dim_b = 16, 2048, 256
    xb = jax.random.normal(k4, (mb, in_dim_b), dtype=jnp.float32)
    wb = jax.random.normal(k5, (out_dim_b, in_dim_b), dtype=jnp.float32)
    bb = jax.random.normal(k6, (out_dim_b,), dtype=jnp.float32)
    out_wide = equal_linear(xb, wb, bias=bb, lr_mul=1.0, activation=None)

    jax.block_until_ready((out_bias, out_act, out_wide))

    ref_bias = _reference(x, weight, bias, lr_mul, None)
    ref_act = _reference(x, weight, bias, lr_mul, "lrelu")
    ref_wide = _reference(xb, wb, bb, 1.0, None)

    assert out_bias.shape == (batch, out_dim) and out_bias.dtype == x.dtype
    assert out_act.shape == (batch, out_dim) and out_act.dtype == x.dtype
    assert out_wide.shape == (mb, out_dim_b) and out_wide.dtype == xb.dtype

    # bf16 operands / f32 accumulation -> compare to f32 reference with bf16 tolerance.
    assert jnp.allclose(out_bias, ref_bias, atol=5e-2, rtol=5e-2), "mismatch (bias branch)"
    assert jnp.allclose(out_act, ref_act, atol=5e-2, rtol=5e-2), "mismatch (activation branch)"
    assert jnp.allclose(out_wide, ref_wide, atol=5e-2, rtol=5e-2), "mismatch (multi-K branch)"

    print("KERNEL_OK")
</pallas_src>

<mosaic_0001>
module attributes {stable_mosaic.version = 11 : i64} {
  func.func @_el_kernel_single_k(%arg0: i32, %arg1: i32, %arg2: memref<16x128xbf16, #tpu.memory_space<vmem>>, %arg3: memref<128x128xbf16, #tpu.memory_space<vmem>>, %arg4: memref<1x128xf32, #tpu.memory_space<vmem>>, %arg5: memref<16x128xf32, #tpu.memory_space<vmem>>) attributes {dimension_semantics = [#tpu.dimension_semantics<parallel>, #tpu.dimension_semantics<parallel>], iteration_bounds = array<i64: 1, 1>, scalar_prefetch = 0 : i64, scratch_operands = 0 : i64, tpu.core_type = #tpu.core_type<tc>, window_params = [{transform_indices = @transform_0, window_bounds = array<i64: 16, 128>}, {transform_indices = @transform_1, window_bounds = array<i64: 128, 128>}, {transform_indices = @transform_2, window_bounds = array<i64: 1, 128>}, {transform_indices = @transform_3, window_bounds = array<i64: 16, 128>}]} {
    %c0 = arith.constant 0 : index
    %c0_0 = arith.constant 0 : index
    %0 = vector.load %arg2[%c0, %c0_0] : memref<16x128xbf16, #tpu.memory_space<vmem>>, vector<16x128xbf16>
    %c0_1 = arith.constant 0 : index
    %c0_2 = arith.constant 0 : index
    %1 = vector.load %arg3[%c0_1, %c0_2] : memref<128x128xbf16, #tpu.memory_space<vmem>>, vector<128x128xbf16>
    %cst = arith.constant dense<0.000000e+00> : vector<16x128xf32>
    %2 = tpu.matmul %0, %1, %cst {dimension_numbers = #tpu.dot_dimension_numbers<[1], [0], [0], [1], [0, 0, 1, 1], [], []>} : vector<16x128xbf16>, vector<128x128xbf16>, vector<16x128xf32> -> vector<16x128xf32>
    %cst_3 = arith.constant 0.0883883461 : f32
    %3 = vector.broadcast %cst_3 : f32 to vector<16x128xf32>
    %4 = arith.mulf %2, %3 : vector<16x128xf32>
    %c0_4 = arith.constant 0 : index
    %c0_5 = arith.constant 0 : index
    %5 = vector.load %arg4[%c0_4, %c0_5] : memref<1x128xf32, #tpu.memory_space<vmem>>, vector<1x128xf32>
    %cst_6 = arith.constant 5.000000e-01 : f32
    %6 = vector.broadcast %cst_6 : f32 to vector<1x128xf32>
    %7 = arith.mulf %5, %6 : vector<1x128xf32>
    %8 = vector.broadcast %7 : vector<1x128xf32> to vector<16x128xf32>
    %9 = arith.addf %4, %8 : vector<16x128xf32>
    %c0_7 = arith.constant 0 : index
    %c0_8 = arith.constant 0 : index
    %10 = vector.load %arg5[%c0_7, %c0_8] : memref<16x128xf32, #tpu.memory_space<vmem>>, vector<16x128xf32>
    tpu.vector_store %arg5[%c0_7, %c0_8], %9 {strides = array<i32>} : memref<16x128xf32, #tpu.memory_space<vmem>>, vector<16x128xf32>,
    return
  }
  func.func @transform_0(%arg0: i32, %arg1: i32) -> (i32, i32) {
    %c0_i32 = arith.constant 0 : i32
    %c0_i32_0 = arith.constant 0 : i32
    return %arg0, %c0_i32 : i32, i32
  }
  func.func @transform_1(%arg0: i32, %arg1: i32) -> (i32, i32) {
    %c0_i32 = arith.constant 0 : i32
    %c0_i32_0 = arith.constant 0 : i32
    return %c0_i32, %arg1 : i32, i32
  }
  func.func @transform_2(%arg0: i32, %arg1: i32) -> (i32, i32) {
    %c0_i32 = arith.constant 0 : i32
    %c0_i32_0 = arith.constant 0 : i32
    return %c0_i32, %arg1 : i32, i32
  }
  func.func @transform_3(%arg0: i32, %arg1: i32) -> (i32, i32) {
    %c0_i32 = arith.constant 0 : i32
    return %arg0, %arg1 : i32, i32
  }
}

</mosaic_0001>

<llo_original>
// kernel: tpu_custom_call.1
$region0: #{tpu_custom_call.1}
  #allocation0 [shape = 'u32[]', space=smem, size = 0x4, offset = 0x4, fixed_abs, tag = 'smem constant byte address 0x4 - core index']
  #allocation1 [shape = 'u32[144,128]{1,0:T(1,128)}', space=vmem, size = 0x12000, scoped, tag = 'internal scratch']
  %s0 = inlined_call_operand.hbm [shape: bf16[16,128], index: 0, kind: input, shape index: {}]
  %s1 = inlined_call_operand.hbm [shape: bf16[128,128], index: 1, kind: input, shape index: {}]
  %s2 = inlined_call_operand.vmem [shape: f32[1,128], index: 2, kind: input, shape index: {}]
  %s3 = inlined_call_operand.hbm [shape: f32[16,128], index: 3, kind: output, shape index: {}]
  %s4 = sld [smem:[#allocation0]]
  $region30: #{tpu_custom_call.1} parent=0
    _
  %s6 = ssub.s32 1, %s4
  %s7 = scalar_select 0, %s6, %s4
  $region1: #{tpu_custom_call.1} parent=0
    #allocation2 [shape = 'u8[4096]{0}', space=vmem, size = 0x1000, scoped, tag = 'input window, operand 0, single buffered']
    #allocation3 [shape = 's32[1]{0}', space=sflag, size = 0x4, scoped, tag = 'scoped memory for tpu_custom_call.1']
    #allocation4 [shape = 's32[1]{0}', space=sflag, size = 0x4, scoped, tag = 'scoped memory for tpu_custom_call.1']
    #allocation5 [shape = 'u8[32768]{0}', space=vmem, size = 0x8000, scoped, tag = 'input window, operand 1, single buffered']
    #allocation6 [shape = 's32[1]{0}', space=sflag, size = 0x4, scoped, tag = 'scoped memory for tpu_custom_call.1']
    #allocation7 [shape = 'u8[8192]{0}', space=vmem, size = 0x2000, scoped, tag = 'output window, operand 0, single buffered']
    %8 = vsyncpa [#allocation3], 0
    %9 = vsyncpa [#allocation6], 0
    %10 = vsyncpa [#allocation4], 0
    // Predicated region
    $region2: #{tpu_custom_call.1} parent=1 // pred_check
      _
    $region3: #{tpu_custom_call.1} parent=1 // pred_check_branch
      %12 = sbr.rel (0) target = $region5
    $region4: #{tpu_custom_call.1} parent=1 // pred_region
      %s14 = ssub.s32 128, 128
      %15 = vsyncadd [#allocation3], %s14
      %s16 = sshll.u32 [#allocation2], 4
      %s17 = int_to_ptr.vmem [resolvable:$true] %s16
      %22 = dma.hbm_to_vmem [thread:$0]  %s0, 128, %s17, [#allocation3], 64, 64, 4
    $region5: #{tpu_custom_call.1} parent=1 // pred_fallthru
      _
    // Predicated region
    $region6: #{tpu_custom_call.1} parent=1 // pred_check
      _
    $region7: #{tpu_custom_call.1} parent=1 // pred_check_branch
      %24 = sbr.rel (0) target = $region9
    $region8: #{tpu_custom_call.1} parent=1 // pred_region
      %s26 = ssub.s32 1024, 1024
      %27 = vsyncadd [#allocation6], %s26
      %s28 = sshll.u32 [#allocation5], 4
      %s29 = int_to_ptr.vmem [resolvable:$true] %s28
      %34 = dma.hbm_to_vmem [thread:$0]  %s1, 1024, %s29, [#allocation6], 64, 64, 4
    $region9: #{tpu_custom_call.1} parent=1 // pred_fallthru
      _
    // Predicated region
    $region10: #{tpu_custom_call.1} parent=1 // pred_check
      _
    $region11: #{tpu_custom_call.1} parent=1 // pred_check_branch
      %36 = sbr.rel (0) target = $region13
    $region12: #{tpu_custom_call.1} parent=1 // pred_region
      _
    $region13: #{tpu_custom_call.1} parent=1 // pred_fallthru
      _
    // Predicated region
    $region14: #{tpu_custom_call.1} parent=1 // pred_check
      _
    $region15: #{tpu_custom_call.1} parent=1 // pred_check_branch
      %38 = sbr.rel (0) target = $region17
    $region16: #{tpu_custom_call.1} parent=1 // pred_region
      %39 = dma.done [#allocation3], 128
    $region17: #{tpu_custom_call.1} parent=1 // pred_fallthru
      _
    // Predicated region
    $region18: #{tpu_custom_call.1} parent=1 // pred_check
      _
    $region19: #{tpu_custom_call.1} parent=1 // pred_check_branch
      %41 = sbr.rel (0) target = $region21
    $region20: #{tpu_custom_call.1} parent=1 // pred_region
      %42 = dma.done [#allocation6], 1024
    $region21: #{tpu_custom_call.1} parent=1 // pred_fallthru
      _
    %v44 = vld [vmem:[#allocation2] sm:$0xf]
    %v45 = vld [vmem:[#allocation2 + $0x4] sm:$0xf]
    %v46 = vld [vmem:[#allocation5] sm:$0xf]
    %v47 = vld [vmem:[#allocation5 + $0x4] sm:$0xf]
    %v48 = vld [vmem:[#allocation5 + $0x8] sm:$0xf]
    %v49 = vld [vmem:[#allocation5 + $0xc] sm:$0xf]
    %v50 = vld [vmem:[#allocation5 + $0x10] sm:$0xf]
    %v51 = vld [vmem:[#allocation5 + $0x14] sm:$0xf]
    %v52 = vld [vmem:[#allocation5 + $0x18] sm:$0xf]
    %v53 = vld [vmem:[#allocation5 + $0x1c] sm:$0xf]
    %v54 = vld [vmem:[#allocation5 + $0x20] sm:$0xf]
    %v55 = vld [vmem:[#allocation5 + $0x24] sm:$0xf]
    %v56 = vld [vmem:[#allocation5 + $0x28] sm:$0xf]
    %v57 = vld [vmem:[#allocation5 + $0x2c] sm:$0xf]
    %v58 = vld [vmem:[#allocation5 + $0x30] sm:$0xf]
    %v59 = vld [vmem:[#allocation5 + $0x34] sm:$0xf]
    %v60 = vld [vmem:[#allocation5 + $0x38] sm:$0xf]
    %v61 = vld [vmem:[#allocation5 + $0x3c] sm:$0xf]
    %v64 = vunpack.c.l.b16 %v44
    %v65 = vunpack.c.l.b16 %v45
    %v66 = vpack.c.b16 %v65, %v64
    %v84 = vunpack.c.l.b16 %v46
    %v85 = vunpack.c.l.b16 %v47
    %v86 = vunpack.c.l.b16 %v48
    %v87 = vunpack.c.l.b16 %v49
    %v88 = vunpack.c.l.b16 %v50
    %v89 = vunpack.c.l.b16 %v51
    %v90 = vunpack.c.l.b16 %v52
    %v91 = vunpack.c.l.b16 %v53
    %v92 = vunpack.c.l.b16 %v54
    %v93 = vunpack.c.l.b16 %v55
    %v94 = vunpack.c.l.b16 %v56
    %v95 = vunpack.c.l.b16 %v57
    %v96 = vunpack.c.l.b16 %v58
    %v97 = vunpack.c.l.b16 %v59
    %v98 = vunpack.c.l.b16 %v60
    %v99 = vunpack.c.l.b16 %v61
    %v100 = vpack.c.b16 %v85, %v84
    %v101 = vpack.c.b16 %v87, %v86
    %v102 = vpack.c.b16 %v89, %v88
    %v103 = vpack.c.b16 %v91, %v90
    %v104 = vpack.c.b16 %v93, %v92
    %v105 = vpack.c.b16 %v95, %v94
    %v106 = vpack.c.b16 %v97, %v96
    %v107 = vpack.c.b16 %v99, %v98
    %116 = vmatprep.subr.bf16.mxu0 0
    %117 = vmatpush1.bf16.msra.mxu0 %v100
    %118 = vmatprep.subr.bf16.mxu0 0
    %119 = vmatpush1.bf16.msra.mxu0 %v101
    %120 = vmatprep.subr.bf16.mxu0 0
    %121 = vmatpush1.bf16.msra.mxu0 %v102
    %122 = vmatprep.subr.bf16.mxu0 0
    %123 = vmatpush1.bf16.msra.mxu0 %v103
    %124 = vmatprep.subr.bf16.mxu0 0
    %125 = vmatpush1.bf16.msra.mxu0 %v104
    %126 = vmatprep.subr.bf16.mxu0 0
    %127 = vmatpush1.bf16.msra.mxu0 %v105
    %128 = vmatprep.subr.bf16.mxu0 0
    %129 = vmatpush1.bf16.msra.mxu0 %v106
    %130 = vmatprep.subr.bf16.mxu0 0
    %131 = vmatpush1.bf16.msra.mxu0 %v107
    %132 = vmatprep.subr.bf16.mxu0 0
    %133 = vmatpush1.bf16.msra.mxu0 0
    %134 = vmatprep.subr.bf16.mxu0 0
    %135 = vmatpush1.bf16.msra.mxu0 0
    %136 = vmatprep.subr.bf16.mxu0 0
    %137 = vmatpush1.bf16.msra.mxu0 0
    %138 = vmatprep.subr.bf16.mxu0 0
    %139 = vmatpush1.bf16.msra.mxu0 0
    %140 = vmatprep.subr.bf16.mxu0 0
    %141 = vmatpush1.bf16.msra.mxu0 0
    %142 = vmatprep.subr.bf16.mxu0 0
    %143 = vmatpush1.bf16.msra.mxu0 0
    %144 = vmatprep.subr.bf16.mxu0 0
    %145 = vmatpush1.bf16.msra.mxu0 0
    %146 = vmatprep.subr.bf16.mxu0 0
    %147 = vmatpush1.bf16.msra.mxu0 0
    %148 = vmatprep.mubr.bf16.mxu0 0
    %149 = vmatmul.mubr.bf16.gmra.mrb[0].mxu0 %v66
    %v150 = vpop.f32.mrb[0].mxu0
    %v151 = vadd.f32 0.0, %v150
    %v152 = vpop.f32.mrb[0].mxu0
    %v153 = vpop.f32.mrb[0].mxu0
    %v154 = vadd.f32 0.0, %v153
    %v155 = vpop.f32.mrb[0].mxu0
    %156 = vdwg.mxu0
    %v157 = vmul.f32 %v151, 0.088388346
    %v158 = vmul.f32 %v154, 0.088388346
    %v159 = vld [vmem:[%s2] sm:$0x1]
    %v160 = vmul.f32 %v159, 0.5
    %v162 = vlaneseq
    %v163 = vshrl.u32 %v162, 7
    %v164 = vsub.s32 0, %v163
    %v165 = vrot.slane %v160, %v164
    %v167 = vadd.f32 %v157, %v165
    %v168 = vadd.f32 %v158, %v165
    %169 = vst [vmem:[#allocation7] sm:$0xff] %v167
    %170 = vst [vmem:[#allocation7 + $0x8] sm:$0xff] %v168
    // Predicated region
    $region22: #{tpu_custom_call.1} parent=1 // pred_check
      _
    $region23: #{tpu_custom_call.1} parent=1 // pred_check_branch
      %172 = sbr.rel (0) target = $region25
    $region24: #{tpu_custom_call.1} parent=1 // pred_region
      %s174 = ssub.s32 256, 256
      %175 = vsyncadd [#allocation4], %s174
      %s176 = sshll.u32 [#allocation7], 4
      %s177 = int_to_ptr.vmem [resolvable:$true] %s176
      %182 = dma.vmem_to_hbm [thread:$0]  %s177, 256, %s3, [#allocation4], 128, 128, 8
    $region25: #{tpu_custom_call.1} parent=1 // pred_fallthru
      _
    // Predicated region
    $region26: #{tpu_custom_call.1} parent=1 // pred_check
      _
    $region27: #{tpu_custom_call.1} parent=1 // pred_check_branch
      %184 = sbr.rel (0) target = $region29
    $region28: #{tpu_custom_call.1} parent=1 // pred_region
      %185 = dma.done [#allocation4], 256
    $region29: #{tpu_custom_call.1} parent=1 // pred_fallthru
      _
    %186 = vsyncpa [#allocation3], 1
    %187 = vsyncpa [#allocation6], 1
    %188 = vsyncpa [#allocation4], 1

</llo_original>
